<compile_context>
chip_gen: v5e
topology: v5e:2x2
jax: 0.10.0
libtpu: 0.0.40
codegen_flags: <defaults>
</compile_context>

<pallas_src>
import functools

import numpy as np
import jax
import jax.numpy as jnp
from jax import lax
from jax.experimental import pallas as pl
from jax.experimental.pallas import tpu as pltpu


def _round_up(x, m):
    return ((x + m - 1) // m) * m


def _pick_batch_tile(batch, fe_pad, k_pad):
    """Rows per grid step: ~1 MiB output slab, multiple of 8, >=2 tiles if possible."""
    b8 = _round_up(max(batch, 1), 8)
    bt_out = (1 << 20) // (fe_pad * 4)          # ~1 MiB output tile
    bt_oh = (4 << 20) // (k_pad * 4)            # keep one-hot working set ~4 MiB
    bt = max(8, (min(2048, bt_out, bt_oh) // 8) * 8)
    if b8 >= 16:                                # guarantee >=2 tiles (v7x megacore)
        bt = min(bt, max(8, ((b8 // 2) // 8) * 8))
    return min(bt, b8)


@functools.lru_cache(maxsize=None)
def _build_features_embedding_call(b_pad, bt, num_fields, vpad, fe_pad, dtype_name):
    dtype = jnp.dtype(dtype_name)
    k_pad = num_fields * vpad
    n_tiles = b_pad // bt

    def kernel(idx_ref, wblk_ref, out_ref):
        # idx_ref:  (Bt, F)        int32 per-field (offset-free) indices, VMEM tile
        # wblk_ref: (F*Vpad, FEp)  block-diagonal packed embedding table, VMEM
        # out_ref:  (Bt, FEp)      lane-dense output slab
        idx = idx_ref[...]
        lanes = lax.broadcasted_iota(jnp.int32, (bt, vpad), 1)
        parts = [
            (lanes == idx[:, f:f + 1]).astype(dtype)     # (Bt, Vpad) one-hot
            for f in range(num_fields)                   # F is small & static
        ]
        onehot = jnp.concatenate(parts, axis=-1)         # (Bt, F*Vpad)
        acc = jnp.dot(onehot, wblk_ref[...],
                      preferred_element_type=jnp.float32,
                      precision=lax.Precision.HIGHEST)   # exact f32 gather-by-matmul
        out_ref[...] = acc.astype(out_ref.dtype)

    vmem_need = (2 * bt * num_fields * 4        # index tile (double-buffered)
                 + 2 * k_pad * fe_pad * 4       # packed weight (headroom even if 1x)
                 + 2 * bt * fe_pad * 4          # output tile (double-buffered)
                 + bt * k_pad * 4               # one-hot working set
                 + (8 << 20))                   # slack for spills
    vmem_limit = int(min(max(vmem_need, 32 << 20), 64 << 20))

    return pl.pallas_call(
        kernel,
        out_shape=jax.ShapeDtypeStruct((b_pad, fe_pad), dtype),
        grid_spec=pltpu.PrefetchScalarGridSpec(
            num_scalar_prefetch=0,
            grid=(n_tiles,),
            in_specs=[
                # Per-batch-tile indices, pipelined through VMEM.
                pl.BlockSpec((bt, num_fields), lambda i: (i, 0)),
                # Resident packed table: constant block -> single-buffered.
                pl.BlockSpec((k_pad, fe_pad), lambda i: (0, 0),
                             pipeline_mode=pl.Buffered(1)),
            ],
            out_specs=pl.BlockSpec((bt, fe_pad), lambda i: (i, 0)),
        ),
        compiler_params=pltpu.CompilerParams(
            dimension_semantics=("parallel",),
            vmem_limit_bytes=vmem_limit),
    )


@functools.partial(jax.jit,
                   static_argnames=("num_fields", "embed_dim", "vpad", "fe_pad"))
def _features_embedding_forward(x, packed_weight, *, num_fields, embed_dim,
                                vpad, fe_pad):
    batch = x.shape[0]
    k_pad = num_fields * vpad
    bt = _pick_batch_tile(batch, fe_pad, k_pad)
    b_pad = _round_up(batch, bt)

    xi = x.astype(jnp.int32)
    if b_pad != batch:
        xi = jnp.pad(xi, ((0, b_pad - batch), (0, 0)))   # padded rows -> index 0

    call = _build_features_embedding_call(b_pad, bt, num_fields, vpad, fe_pad,
                                          packed_weight.dtype.name)
    out2d = call(xi, packed_weight)                      # (B_pad, FE_pad), lane-dense
    fe = num_fields * embed_dim
    return out2d[:batch, :fe].reshape(batch, num_fields, embed_dim)


class FeaturesEmbeddingPallas:
    """JAX/Pallas port of the PyTorch FeaturesEmbedding module."""

    def __init__(self, field_dims, embed_dim, key):
        self.field_dims = [int(d) for d in field_dims]
        self.embed_dim = int(embed_dim)
        self.num_fields = len(self.field_dims)
        vocab = int(sum(self.field_dims))

        # nn.Embedding(sum(field_dims), embed_dim) with nn.init.normal_(std=0.01).
        self.weight = 0.01 * jax.random.normal(
            key, (vocab, self.embed_dim), dtype=jnp.float32)
        # offsets = (0, *cumsum(field_dims)[:-1])  (kept for reference checks)
        self.offsets = jnp.asarray(
            np.array((0, *np.cumsum(self.field_dims)[:-1]), dtype=np.int32))

        # Pack the table block-diagonally: block f holds field f's rows, so the
        # kernel can use raw per-field indices and one MXU matmul whose result is
        # already in the lane-dense (B, F*E) layout.
        #   - per-field contraction dim padded to lane-aligned Vpad
        #   - output dim padded so the stored last dim is a multiple of 128
        self.vpad = _round_up(max(self.field_dims), 128)
        fe = self.num_fields * self.embed_dim
        self.fe_pad = _round_up(fe, 128)
        packed = np.zeros((self.num_fields * self.vpad, self.fe_pad),
                          dtype=np.float32)
        w_np = np.asarray(self.weight)
        start = 0
        for f, d in enumerate(self.field_dims):
            packed[f * self.vpad:f * self.vpad + d,
                   f * self.embed_dim:(f + 1) * self.embed_dim] = \
                w_np[start:start + d]
            start += d
        self.packed_weight = jnp.asarray(packed)

    def __call__(self, x):
        return _features_embedding_forward(
            x, self.packed_weight,
            num_fields=self.num_fields, embed_dim=self.embed_dim,
            vpad=self.vpad, fe_pad=self.fe_pad)


if __name__ == "__main__":
    key = jax.random.PRNGKey(0)
    k_w, k_x = jax.random.split(key)

    field_dims = [3, 5, 7, 9]      # vocab = 24, F = 4 fields
    embed_dim = 32                 # F*E = 128 -> lane-dense output block
    batch = 8

    module = FeaturesEmbeddingPallas(field_dims, embed_dim, k_w)

    # Each column j of x must be a valid index within its field: [0, field_dims[j]).
    maxvals = jnp.asarray(field_dims, dtype=jnp.int32)[None, :]
    x = jax.random.randint(k_x, (batch, len(field_dims)), 0, 10 ** 6,
                           dtype=jnp.int32) % maxvals

    out = module(x)
    jax.block_until_ready(out)

    # Pure-JAX reference: plain gather from the flat (vocab, E) table.
    ref = module.weight[(x + module.offsets[None, :]).astype(jnp.int32)]
    assert out.shape == (batch, len(field_dims), embed_dim)
    np.testing.assert_allclose(np.asarray(out), np.asarray(ref),
                               rtol=1e-6, atol=1e-7)

    print("KERNEL_OK")
</pallas_src>

<mosaic_0001>
module attributes {stable_mosaic.version = 11 : i64} {
  func.func @kernel(%arg0: i32, %arg1: memref<8x4xi32, #tpu.memory_space<vmem>>, %arg2: memref<512x128xf32, #tpu.memory_space<vmem>>, %arg3: memref<8x128xf32, #tpu.memory_space<vmem>>) attributes {dimension_semantics = [#tpu.dimension_semantics<parallel>], iteration_bounds = array<i64: 1>, scalar_prefetch = 0 : i64, scratch_operands = 0 : i64, tpu.core_type = #tpu.core_type<tc>, window_params = [{transform_indices = @transform_0, window_bounds = array<i64: 8, 4>}, {pipeline_mode = #tpu.pipeline_mode<synchronous>, transform_indices = @transform_1, window_bounds = array<i64: 512, 128>}, {transform_indices = @transform_2, window_bounds = array<i64: 8, 128>}]} {
    %c0 = arith.constant 0 : index
    %c0_0 = arith.constant 0 : index
    %0 = vector.load %arg1[%c0, %c0_0] : memref<8x4xi32, #tpu.memory_space<vmem>>, vector<8x4xi32>
    %1 = tpu.iota {dimensions = array<i32: 1>} : vector<8x128xi32>
    %2 = vector.extract_strided_slice %0 {offsets = [0, 0], sizes = [8, 1], strides = [1, 1]} : vector<8x4xi32> to vector<8x1xi32>
    %3 = vector.broadcast %2 : vector<8x1xi32> to vector<8x128xi32>
    %4 = arith.cmpi eq, %1, %3 : vector<8x128xi32>
    %5 = arith.extui %4 : vector<8x128xi1> to vector<8x128xi32>
    %6 = arith.sitofp %5 : vector<8x128xi32> to vector<8x128xf32>
    %7 = vector.extract_strided_slice %0 {offsets = [0, 1], sizes = [8, 1], strides = [1, 1]} : vector<8x4xi32> to vector<8x1xi32>
    %8 = vector.broadcast %7 : vector<8x1xi32> to vector<8x128xi32>
    %9 = arith.cmpi eq, %1, %8 : vector<8x128xi32>
    %10 = arith.extui %9 : vector<8x128xi1> to vector<8x128xi32>
    %11 = arith.sitofp %10 : vector<8x128xi32> to vector<8x128xf32>
    %12 = vector.extract_strided_slice %0 {offsets = [0, 2], sizes = [8, 1], strides = [1, 1]} : vector<8x4xi32> to vector<8x1xi32>
    %13 = vector.broadcast %12 : vector<8x1xi32> to vector<8x128xi32>
    %14 = arith.cmpi eq, %1, %13 : vector<8x128xi32>
    %15 = arith.extui %14 : vector<8x128xi1> to vector<8x128xi32>
    %16 = arith.sitofp %15 : vector<8x128xi32> to vector<8x128xf32>
    %17 = vector.extract_strided_slice %0 {offsets = [0, 3], sizes = [8, 1], strides = [1, 1]} : vector<8x4xi32> to vector<8x1xi32>
    %18 = vector.broadcast %17 : vector<8x1xi32> to vector<8x128xi32>
    %19 = arith.cmpi eq, %1, %18 : vector<8x128xi32>
    %20 = arith.extui %19 : vector<8x128xi1> to vector<8x128xi32>
    %21 = arith.sitofp %20 : vector<8x128xi32> to vector<8x128xf32>
    %22 = tpu.concatenate %6, %11, %16, %21 in 1 : vector<8x128xf32>, vector<8x128xf32>, vector<8x128xf32>, vector<8x128xf32> -> vector<8x512xf32>
    %c0_1 = arith.constant 0 : index
    %c0_2 = arith.constant 0 : index
    %23 = vector.load %arg2[%c0_1, %c0_2] : memref<512x128xf32, #tpu.memory_space<vmem>>, vector<512x128xf32>
    %cst = arith.constant dense<0.000000e+00> : vector<8x128xf32>
    %24 = tpu.matmul %22, %23, %cst {dimension_numbers = #tpu.dot_dimension_numbers<[1], [0], [0], [1], [0, 0, 1, 1], [], []>, precision = #tpu.contract_precision<fp32>} : vector<8x512xf32>, vector<512x128xf32>, vector<8x128xf32> -> vector<8x128xf32>
    %c0_3 = arith.constant 0 : index
    %c0_4 = arith.constant 0 : index
    %25 = vector.load %arg3[%c0_3, %c0_4] : memref<8x128xf32, #tpu.memory_space<vmem>>, vector<8x128xf32>
    tpu.vector_store %arg3[%c0_3, %c0_4], %24 {strides = array<i32>} : memref<8x128xf32, #tpu.memory_space<vmem>>, vector<8x128xf32>,
    return
  }
  func.func @transform_0(%arg0: i32) -> (i32, i32) {
    %c0_i32 = arith.constant 0 : i32
    %c0_i32_0 = arith.constant 0 : i32
    return %arg0, %c0_i32 : i32, i32
  }
  func.func @transform_1(%arg0: i32) -> (i32, i32) {
    %c0_i32 = arith.constant 0 : i32
    %c0_i32_0 = arith.constant 0 : i32
    %c0_i32_1 = arith.constant 0 : i32
    return %c0_i32, %c0_i32_0 : i32, i32
  }
  func.func @transform_2(%arg0: i32) -> (i32, i32) {
    %c0_i32 = arith.constant 0 : i32
    %c0_i32_0 = arith.constant 0 : i32
    return %arg0, %c0_i32 : i32, i32
  }
}

</mosaic_0001>

<llo_original>
// kernel: _features_embedding_forward.1
$region0: #{_features_embedding_forward.1}
  #allocation0 [shape = 'u32[]', space=smem, size = 0x4, offset = 0x4, fixed_abs, tag = 'smem constant byte address 0x4 - core index']
  #allocation1 [shape = 'u32[72,128]{1,0:T(1,128)}', space=vmem, size = 0x9000, scoped, tag = 'internal scratch']
  %s0 = inlined_call_operand.vmem [shape: s32[8,4], index: 0, kind: input, shape index: {}]
  %s1 = inlined_call_operand.hbm [shape: f32[512,128], index: 1, kind: input, shape index: {}]
  %s2 = inlined_call_operand.vmem [shape: f32[8,128], index: 2, kind: output, shape index: {}]
  %s3 = sld [smem:[#allocation0]]
  $region22: #{_features_embedding_forward.1} parent=0
    _
  %s5 = ssub.s32 1, %s3
  %s6 = scalar_select 0, %s5, %s3
  $region1: #{_features_embedding_forward.1} parent=0
    #allocation2 [shape = 'u8[262144]{0}', space=vmem, size = 0x40000, scoped, tag = 'input window, operand 1, single buffered']
    #allocation3 [shape = 's32[1]{0}', space=sflag, size = 0x4, scoped, tag = 'scoped memory for _features_embedding_forward.1']
    %7 = vsyncpa [#allocation3], 0
    // Predicated region
    $region2: #{_features_embedding_forward.1} parent=1 // pred_check
      _
    $region3: #{_features_embedding_forward.1} parent=1 // pred_check_branch
      %9 = sbr.rel (0) target = $region5
    $region4: #{_features_embedding_forward.1} parent=1 // pred_region
      _
    $region5: #{_features_embedding_forward.1} parent=1 // pred_fallthru
      _
    // Predicated region
    $region6: #{_features_embedding_forward.1} parent=1 // pred_check
      _
    $region7: #{_features_embedding_forward.1} parent=1 // pred_check_branch
      %11 = sbr.rel (0) target = $region9
    $region8: #{_features_embedding_forward.1} parent=1 // pred_region
      %13 = vsyncadd [#allocation3], 0
      %s14 = sshll.u32 %s1, 4
      %s15 = int_to_ptr.hbm [resolvable:$true] %s14
      %s16 = sshll.u32 [#allocation2], 4
      %s17 = int_to_ptr.vmem [resolvable:$true] %s16
      %22 = dma.hbm_to_vmem [thread:$0]  %s15, 8192, %s17, [#allocation3], 128, 128, 8
    $region9: #{_features_embedding_forward.1} parent=1 // pred_fallthru
      _
    // Predicated region
    $region10: #{_features_embedding_forward.1} parent=1 // pred_check
      _
    $region11: #{_features_embedding_forward.1} parent=1 // pred_check_branch
      %24 = sbr.rel (0) target = $region13
    $region12: #{_features_embedding_forward.1} parent=1 // pred_region
      %26 = dma.done [#allocation3], 8192
    $region13: #{_features_embedding_forward.1} parent=1 // pred_fallthru
      _
    %v27 = vld [vmem:[%s0] sm:$0xff]
    %v28 = vlaneseq
    %v29 = vand.u32 %v28, 127
    %30 = vset.pattern.permute.xlu0 0
    %31 = vperm.xlu0 %30, %v27
    %v32 = vpop.permute.xlu0 %31
    %vm33 = vcmp.eq.s32.totalorder %v29, %v32
    %v34 = vsel %vm33, 1, 0
    %v35 = vcvt.s32.f32 %v34
    %36 = vset.pattern.permute.xlu0 1
    %37 = vperm.xlu0 %36, %v27
    %v38 = vpop.permute.xlu0 %37
    %vm39 = vcmp.eq.s32.totalorder %v29, %v38
    %v40 = vsel %vm39, 1, 0
    %v41 = vcvt.s32.f32 %v40
    %42 = vset.pattern.permute.xlu0 2
    %43 = vperm.xlu0 %42, %v27
    %v44 = vpop.permute.xlu0 %43
    %vm45 = vcmp.eq.s32.totalorder %v29, %v44
    %v46 = vsel %vm45, 1, 0
    %v47 = vcvt.s32.f32 %v46
    %48 = vset.pattern.permute.xlu0 3
    %49 = vperm.xlu0 %48, %v27
    %v50 = vpop.permute.xlu0 %49
    %vm51 = vcmp.eq.s32.totalorder %v29, %v50
    %v52 = vsel %vm51, 1, 0
    %v53 = vcvt.s32.f32 %v52
    %v54 = vld [vmem:[#allocation2] sm:$0xff]
    %v55 = vld [vmem:[#allocation2 + $0x8] sm:$0xff]
    %v56 = vld [vmem:[#allocation2 + $0x10] sm:$0xff]
    %v57 = vld [vmem:[#allocation2 + $0x18] sm:$0xff]
    %v58 = vld [vmem:[#allocation2 + $0x20] sm:$0xff]
    %v59 = vld [vmem:[#allocation2 + $0x28] sm:$0xff]
    %v60 = vld [vmem:[#allocation2 + $0x30] sm:$0xff]
    %v61 = vld [vmem:[#allocation2 + $0x38] sm:$0xff]
    %v62 = vld [vmem:[#allocation2 + $0x40] sm:$0xff]
    %v63 = vld [vmem:[#allocation2 + $0x48] sm:$0xff]
    %v64 = vld [vmem:[#allocation2 + $0x50] sm:$0xff]
    %v65 = vld [vmem:[#allocation2 + $0x58] sm:$0xff]
    %v66 = vld [vmem:[#allocation2 + $0x60] sm:$0xff]
    %v67 = vld [vmem:[#allocation2 + $0x68] sm:$0xff]
    %v68 = vld [vmem:[#allocation2 + $0x70] sm:$0xff]
    %v69 = vld [vmem:[#allocation2 + $0x78] sm:$0xff]
    %v70 = vld [vmem:[#allocation2 + $0x80] sm:$0xff]
    %v71 = vld [vmem:[#allocation2 + $0x88] sm:$0xff]
    %v72 = vld [vmem:[#allocation2 + $0x90] sm:$0xff]
    %v73 = vld [vmem:[#allocation2 + $0x98] sm:$0xff]
    %v74 = vld [vmem:[#allocation2 + $0xa0] sm:$0xff]
    %v75 = vld [vmem:[#allocation2 + $0xa8] sm:$0xff]
    %v76 = vld [vmem:[#allocation2 + $0xb0] sm:$0xff]
    %v77 = vld [vmem:[#allocation2 + $0xb8] sm:$0xff]
    %v78 = vld [vmem:[#allocation2 + $0xc0] sm:$0xff]
    %v79 = vld [vmem:[#allocation2 + $0xc8] sm:$0xff]
    %v80 = vld [vmem:[#allocation2 + $0xd0] sm:$0xff]
    %v81 = vld [vmem:[#allocation2 + $0xd8] sm:$0xff]
    %v82 = vld [vmem:[#allocation2 + $0xe0] sm:$0xff]
    %v83 = vld [vmem:[#allocation2 + $0xe8] sm:$0xff]
    %v84 = vld [vmem:[#allocation2 + $0xf0] sm:$0xff]
    %v85 = vld [vmem:[#allocation2 + $0xf8] sm:$0xff]
    %v86 = vld [vmem:[#allocation2 + $0x100] sm:$0xff]
    %v87 = vld [vmem:[#allocation2 + $0x108] sm:$0xff]
    %v88 = vld [vmem:[#allocation2 + $0x110] sm:$0xff]
    %v89 = vld [vmem:[#allocation2 + $0x118] sm:$0xff]
    %v90 = vld [vmem:[#allocation2 + $0x120] sm:$0xff]
    %v91 = vld [vmem:[#allocation2 + $0x128] sm:$0xff]
    %v92 = vld [vmem:[#allocation2 + $0x130] sm:$0xff]
    %v93 = vld [vmem:[#allocation2 + $0x138] sm:$0xff]
    %v94 = vld [vmem:[#allocation2 + $0x140] sm:$0xff]
    %v95 = vld [vmem:[#allocation2 + $0x148] sm:$0xff]
    %v96 = vld [vmem:[#allocation2 + $0x150] sm:$0xff]
    %v97 = vld [vmem:[#allocation2 + $0x158] sm:$0xff]
    %v98 = vld [vmem:[#allocation2 + $0x160] sm:$0xff]
    %v99 = vld [vmem:[#allocation2 + $0x168] sm:$0xff]
    %v100 = vld [vmem:[#allocation2 + $0x170] sm:$0xff]
    %v101 = vld [vmem:[#allocation2 + $0x178] sm:$0xff]
    %v102 = vld [vmem:[#allocation2 + $0x180] sm:$0xff]
    %v103 = vld [vmem:[#allocation2 + $0x188] sm:$0xff]
    %v104 = vld [vmem:[#allocation2 + $0x190] sm:$0xff]
    %v105 = vld [vmem:[#allocation2 + $0x198] sm:$0xff]
    %v106 = vld [vmem:[#allocation2 + $0x1a0] sm:$0xff]
    %v107 = vld [vmem:[#allocation2 + $0x1a8] sm:$0xff]
    %v108 = vld [vmem:[#allocation2 + $0x1b0] sm:$0xff]
    %v109 = vld [vmem:[#allocation2 + $0x1b8] sm:$0xff]
    %v110 = vld [vmem:[#allocation2 + $0x1c0] sm:$0xff]
    %v111 = vld [vmem:[#allocation2 + $0x1c8] sm:$0xff]
    %v112 = vld [vmem:[#allocation2 + $0x1d0] sm:$0xff]
    %v113 = vld [vmem:[#allocation2 + $0x1d8] sm:$0xff]
    %v114 = vld [vmem:[#allocation2 + $0x1e0] sm:$0xff]
    %v115 = vld [vmem:[#allocation2 + $0x1e8] sm:$0xff]
    %v116 = vld [vmem:[#allocation2 + $0x1f0] sm:$0xff]
    %v117 = vld [vmem:[#allocation2 + $0x1f8] sm:$0xff]
    %v118 = vand.u32 %v69, 4294901760
    %119 = vmatpush.msra.mxu0 %v118
    %v120 = vand.u32 %v68, 4294901760
    %121 = vmatpush.msra.mxu0 %v120
    %v122 = vand.u32 %v67, 4294901760
    %123 = vmatpush.msra.mxu0 %v122
    %v124 = vand.u32 %v66, 4294901760
    %125 = vmatpush.msra.mxu0 %v124
    %v126 = vand.u32 %v65, 4294901760
    %127 = vmatpush.msra.mxu0 %v126
    %v128 = vand.u32 %v64, 4294901760
    %129 = vmatpush.msra.mxu0 %v128
    %v130 = vand.u32 %v63, 4294901760
    %131 = vmatpush.msra.mxu0 %v130
    %v132 = vand.u32 %v62, 4294901760
    %133 = vmatpush.msra.mxu0 %v132
    %v134 = vand.u32 %v61, 4294901760
    %135 = vmatpush.msra.mxu0 %v134
    %v136 = vand.u32 %v60, 4294901760
    %137 = vmatpush.msra.mxu0 %v136
    %v138 = vand.u32 %v59, 4294901760
    %139 = vmatpush.msra.mxu0 %v138
    %v140 = vand.u32 %v58, 4294901760
    %141 = vmatpush.msra.mxu0 %v140
    %v142 = vand.u32 %v57, 4294901760
    %143 = vmatpush.msra.mxu0 %v142
    %v144 = vand.u32 %v56, 4294901760
    %145 = vmatpush.msra.mxu0 %v144
    %v146 = vand.u32 %v55, 4294901760
    %147 = vmatpush.msra.mxu0 %v146
    %v148 = vand.u32 %v54, 4294901760
    %149 = vmatpush.msra.mxu0 %v148
    %v150 = vand.u32 %v35, 4294901760
    %v151 = vsub.f32 %v35, %v150
    %v152 = vand.u32 %v151, 4294901760
    %v153 = vsub.f32 %v151, %v152
    %v154 = vand.u32 %v153, 4294901760
    %155 = vmatmul.f32.gmra.mxu0 %v154
    %v156 = vpop.f32.mrf.mxu0
    %v157 = vadd.f32 0.0, %v156
    %158 = vdwg.mxu0
    %v159 = vand.u32 %v69, 4294901760
    %v160 = vsub.f32 %v69, %v159
    %v161 = vand.u32 %v160, 4294901760
    %v162 = vsub.f32 %v160, %v161
    %v163 = vand.u32 %v162, 4294901760
    %164 = vmatpush.msra.mxu0 %v163
    %v165 = vand.u32 %v68, 4294901760
    %v166 = vsub.f32 %v68, %v165
    %v167 = vand.u32 %v166, 4294901760
    %v168 = vsub.f32 %v166, %v167
    %v169 = vand.u32 %v168, 4294901760
    %170 = vmatpush.msra.mxu0 %v169
    %v171 = vand.u32 %v67, 4294901760
    %v172 = vsub.f32 %v67, %v171
    %v173 = vand.u32 %v172, 4294901760
    %v174 = vsub.f32 %v172, %v173
    %v175 = vand.u32 %v174, 4294901760
    %176 = vmatpush.msra.mxu0 %v175
    %v177 = vand.u32 %v66, 4294901760
    %v178 = vsub.f32 %v66, %v177
    %v179 = vand.u32 %v178, 4294901760
    %v180 = vsub.f32 %v178, %v179
    %v181 = vand.u32 %v180, 4294901760
    %182 = vmatpush.msra.mxu0 %v181
    %v183 = vand.u32 %v65, 4294901760
    %v184 = vsub.f32 %v65, %v183
    %v185 = vand.u32 %v184, 4294901760
    %v186 = vsub.f32 %v184, %v185
    %v187 = vand.u32 %v186, 4294901760
    %188 = vmatpush.msra.mxu0 %v187
    %v189 = vand.u32 %v64, 4294901760
    %v190 = vsub.f32 %v64, %v189
    %v191 = vand.u32 %v190, 4294901760
    %v192 = vsub.f32 %v190, %v191
    %v193 = vand.u32 %v192, 4294901760
    %194 = vmatpush.msra.mxu0 %v193
    %v195 = vand.u32 %v63, 4294901760
    %v196 = vsub.f32 %v63, %v195
    %v197 = vand.u32 %v196, 4294901760
    %v198 = vsub.f32 %v196, %v197
    %v199 = vand.u32 %v198, 4294901760
    %200 = vmatpush.msra.mxu0 %v199
    %v201 = vand.u32 %v62, 4294901760
    %v202 = vsub.f32 %v62, %v201
    %v203 = vand.u32 %v202, 4294901760
    %v204 = vsub.f32 %v202, %v203
    %v205 = vand.u32 %v204, 4294901760
    %206 = vmatpush.msra.mxu0 %v205
    %v207 = vand.u32 %v61, 4294901760
    %v208 = vsub.f32 %v61, %v207
    %v209 = vand.u32 %v208, 4294901760
    %v210 = vsub.f32 %v208, %v209
    %v211 = vand.u32 %v210, 4294901760
    %212 = vmatpush.msra.mxu0 %v211
    %v213 = vand.u32 %v60, 4294901760
    %v214 = vsub.f32 %v60, %v213
    %v215 = vand.u32 %v214, 4294901760
    %v216 = vsub.f32 %v214, %v215
    %v217 = vand.u32 %v216, 4294901760
    %218 = vmatpush.msra.mxu0 %v217
    %v219 = vand.u32 %v59, 4294901760
    %v220 = vsub.f32 %v59, %v219
    %v221 = vand.u32 %v220, 4294901760
    %v222 = vsub.f32 %v220, %v221
    %v223 = vand.u32 %v222, 4294901760
    %224 = vmatpush.msra.mxu0 %v223
    %v225 = vand.u32 %v58, 4294901760
    %v226 = vsub.f32 %v58, %v225
    %v227 = vand.u32 %v226, 4294901760
    %v228 = vsub.f32 %v226, %v227
    %v229 = vand.u32 %v228, 4294901760
    %230 = vmatpush.msra.mxu0 %v229
    %v231 = vand.u32 %v57, 4294901760
    %v232 = vsub.f32 %v57, %v231
    %v233 = vand.u32 %v232, 4294901760
    %v234 = vsub.f32 %v232, %v233
    %v235 = vand.u32 %v234, 4294901760
    %236 = vmatpush.msra.mxu0 %v235
    %v237 = vand.u32 %v56, 4294901760
    %v238 = vsub.f32 %v56, %v237
    %v239 = vand.u32 %v238, 4294901760
    %v240 = vsub.f32 %v238, %v239
    %v241 = vand.u32 %v240, 4294901760
    %242 = vmatpush.msra.mxu0 %v241
    %v243 = vand.u32 %v55, 4294901760
    %v244 = vsub.f32 %v55, %v243
    %v245 = vand.u32 %v244, 4294901760
    %v246 = vsub.f32 %v244, %v245
    %v247 = vand.u32 %v246, 4294901760
    %248 = vmatpush.msra.mxu0 %v247
    %v249 = vand.u32 %v54, 4294901760
    %v250 = vsub.f32 %v54, %v249
    %v251 = vand.u32 %v250, 4294901760
    %v252 = vsub.f32 %v250, %v251
    %v253 = vand.u32 %v252, 4294901760
    %254 = vmatpush.msra.mxu0 %v253
    %v255 = vand.u32 %v35, 4294901760
    %256 = vmatmul.f32.gmra.mxu0 %v255
    %v257 = vpop.f32.mrf.mxu0
    %v258 = vadd.f32 %v157, %v257
    %259 = vdwg.mxu0
    %v260 = vand.u32 %v69, 4294901760
    %v261 = vsub.f32 %v69, %v260
    %262 = vmatpush.msra.mxu0 %v261
    %v263 = vand.u32 %v68, 4294901760
    %v264 = vsub.f32 %v68, %v263
    %265 = vmatpush.msra.mxu0 %v264
    %v266 = vand.u32 %v67, 4294901760
    %v267 = vsub.f32 %v67, %v266
    %268 = vmatpush.msra.mxu0 %v267
    %v269 = vand.u32 %v66, 4294901760
    %v270 = vsub.f32 %v66, %v269
    %271 = vmatpush.msra.mxu0 %v270
    %v272 = vand.u32 %v65, 4294901760
    %v273 = vsub.f32 %v65, %v272
    %274 = vmatpush.msra.mxu0 %v273
    %v275 = vand.u32 %v64, 4294901760
    %v276 = vsub.f32 %v64, %v275
    %277 = vmatpush.msra.mxu0 %v276
    %v278 = vand.u32 %v63, 4294901760
    %v279 = vsub.f32 %v63, %v278
    %280 = vmatpush.msra.mxu0 %v279
    %v281 = vand.u32 %v62, 4294901760
    %v282 = vsub.f32 %v62, %v281
    %283 = vmatpush.msra.mxu0 %v282
    %v284 = vand.u32 %v61, 4294901760
    %v285 = vsub.f32 %v61, %v284
    %286 = vmatpush.msra.mxu0 %v285
    %v287 = vand.u32 %v60, 4294901760
    %v288 = vsub.f32 %v60, %v287
    %289 = vmatpush.msra.mxu0 %v288
    %v290 = vand.u32 %v59, 4294901760
    %v291 = vsub.f32 %v59, %v290
    %292 = vmatpush.msra.mxu0 %v291
    %v293 = vand.u32 %v58, 4294901760
    %v294 = vsub.f32 %v58, %v293
    %295 = vmatpush.msra.mxu0 %v294
    %v296 = vand.u32 %v57, 4294901760
    %v297 = vsub.f32 %v57, %v296
    %298 = vmatpush.msra.mxu0 %v297
    %v299 = vand.u32 %v56, 4294901760
    %v300 = vsub.f32 %v56, %v299
    %301 = vmatpush.msra.mxu0 %v300
    %v302 = vand.u32 %v55, 4294901760
    %v303 = vsub.f32 %v55, %v302
    %304 = vmatpush.msra.mxu0 %v303
    %v305 = vand.u32 %v54, 4294901760
    %v306 = vsub.f32 %v54, %v305
    %307 = vmatpush.msra.mxu0 %v306
    %v308 = vand.u32 %v35, 4294901760
    %v309 = vsub.f32 %v35, %v308
    %310 = vmatmul.f32.gmra.mxu0 %v309
    %v311 = vpop.f32.mrf.mxu0
    %v312 = vadd.f32 %v258, %v311
    %313 = vdwg.mxu0
    %v314 = vand.u32 %v69, 4294901760
    %315 = vmatpush.msra.mxu0 %v314
    %v316 = vand.u32 %v68, 4294901760
    %317 = vmatpush.msra.mxu0 %v316
    %v318 = vand.u32 %v67, 4294901760
    %319 = vmatpush.msra.mxu0 %v318
    %v320 = vand.u32 %v66, 4294901760
    %321 = vmatpush.msra.mxu0 %v320
    %v322 = vand.u32 %v65, 4294901760
    %323 = vmatpush.msra.mxu0 %v322
    %v324 = vand.u32 %v64, 4294901760
    %325 = vmatpush.msra.mxu0 %v324
    %v326 = vand.u32 %v63, 4294901760
    %327 = vmatpush.msra.mxu0 %v326
    %v328 = vand.u32 %v62, 4294901760
    %329 = vmatpush.msra.mxu0 %v328
    %v330 = vand.u32 %v61, 4294901760
    %331 = vmatpush.msra.mxu0 %v330
    %v332 = vand.u32 %v60, 4294901760
    %333 = vmatpush.msra.mxu0 %v332
    %v334 = vand.u32 %v59, 4294901760
    %335 = vmatpush.msra.mxu0 %v334
    %v336 = vand.u32 %v58, 4294901760
    %337 = vmatpush.msra.mxu0 %v336
    %v338 = vand.u32 %v57, 4294901760
    %339 = vmatpush.msra.mxu0 %v338
    %v340 = vand.u32 %v56, 4294901760
    %341 = vmatpush.msra.mxu0 %v340
    %v342 = vand.u32 %v55, 4294901760
    %343 = vmatpush.msra.mxu0 %v342
    %v344 = vand.u32 %v54, 4294901760
    %345 = vmatpush.msra.mxu0 %v344
    %v346 = vand.u32 %v35, 4294901760
    %v347 = vsub.f32 %v35, %v346
    %v348 = vand.u32 %v347, 4294901760
    %349 = vmatmul.f32.gmra.mxu0 %v348
    %v350 = vpop.f32.mrf.mxu0
    %v351 = vadd.f32 %v312, %v350
    %352 = vdwg.mxu0
    %v353 = vand.u32 %v69, 4294901760
    %v354 = vsub.f32 %v69, %v353
    %v355 = vand.u32 %v354, 4294901760
    %356 = vmatpush.msra.mxu0 %v355
    %v357 = vand.u32 %v68, 4294901760
    %v358 = vsub.f32 %v68, %v357
    %v359 = vand.u32 %v358, 4294901760
    %360 = vmatpush.msra.mxu0 %v359
    %v361 = vand.u32 %v67, 4294901760
    %v362 = vsub.f32 %v67, %v361
    %v363 = vand.u32 %v362, 4294901760
    %364 = vmatpush.msra.mxu0 %v363
    %v365 = vand.u32 %v66, 4294901760
    %v366 = vsub.f32 %v66, %v365
    %v367 = vand.u32 %v366, 4294901760
    %368 = vmatpush.msra.mxu0 %v367
    %v369 = vand.u32 %v65, 4294901760
    %v370 = vsub.f32 %v65, %v369
    %v371 = vand.u32 %v370, 4294901760
    %372 = vmatpush.msra.mxu0 %v371
    %v373 = vand.u32 %v64, 4294901760
    %v374 = vsub.f32 %v64, %v373
    %v375 = vand.u32 %v374, 4294901760
    %376 = vmatpush.msra.mxu0 %v375
    %v377 = vand.u32 %v63, 4294901760
    %v378 = vsub.f32 %v63, %v377
    %v379 = vand.u32 %v378, 4294901760
    %380 = vmatpush.msra.mxu0 %v379
    %v381 = vand.u32 %v62, 4294901760
    %v382 = vsub.f32 %v62, %v381
    %v383 = vand.u32 %v382, 4294901760
    %384 = vmatpush.msra.mxu0 %v383
    %v385 = vand.u32 %v61, 4294901760
    %v386 = vsub.f32 %v61, %v385
    %v387 = vand.u32 %v386, 4294901760
    %388 = vmatpush.msra.mxu0 %v387
    %v389 = vand.u32 %v60, 4294901760
    %v390 = vsub.f32 %v60, %v389
    %v391 = vand.u32 %v390, 4294901760
    %392 = vmatpush.msra.mxu0 %v391
    %v393 = vand.u32 %v59, 4294901760
    %v394 = vsub.f32 %v59, %v393
    %v395 = vand.u32 %v394, 4294901760
    %396 = vmatpush.msra.mxu0 %v395
    %v397 = vand.u32 %v58, 4294901760
    %v398 = vsub.f32 %v58, %v397
    %v399 = vand.u32 %v398, 4294901760
    %400 = vmatpush.msra.mxu0 %v399
    %v401 = vand.u32 %v57, 4294901760
    %v402 = vsub.f32 %v57, %v401
    %v403 = vand.u32 %v402, 4294901760
    %404 = vmatpush.msra.mxu0 %v403
    %v405 = vand.u32 %v56, 4294901760
    %v406 = vsub.f32 %v56, %v405
    %v407 = vand.u32 %v406, 4294901760
    %408 = vmatpush.msra.mxu0 %v407
    %v409 = vand.u32 %v55, 4294901760
    %v410 = vsub.f32 %v55, %v409
    %v411 = vand.u32 %v410, 4294901760
    %412 = vmatpush.msra.mxu0 %v411
    %v413 = vand.u32 %v54, 4294901760
    %v414 = vsub.f32 %v54, %v413
    %v415 = vand.u32 %v414, 4294901760
    %416 = vmatpush.msra.mxu0 %v415
    %v417 = vand.u32 %v35, 4294901760
    %418 = vmatmul.f32.gmra.mxu0 %v417
    %v419 = vpop.f32.mrf.mxu0
    %v420 = vadd.f32 %v351, %v419
    %421 = vdwg.mxu0
    %v422 = vand.u32 %v69, 4294901760
    %423 = vmatpush.msra.mxu0 %v422
    %v424 = vand.u32 %v68, 4294901760
    %425 = vmatpush.msra.mxu0 %v424
    %v426 = vand.u32 %v67, 4294901760
    %427 = vmatpush.msra.mxu0 %v426
    %v428 = vand.u32 %v66, 4294901760
    %429 = vmatpush.msra.mxu0 %v428
    %v430 = vand.u32 %v65, 4294901760
    %431 = vmatpush.msra.mxu0 %v430
    %v432 = vand.u32 %v64, 4294901760
    %433 = vmatpush.msra.mxu0 %v432
    %v434 = vand.u32 %v63, 4294901760
    %435 = vmatpush.msra.mxu0 %v434
    %v436 = vand.u32 %v62, 4294901760
    %437 = vmatpush.msra.mxu0 %v436
    %v438 = vand.u32 %v61, 4294901760
    %439 = vmatpush.msra.mxu0 %v438
    %v440 = vand.u32 %v60, 4294901760
    %441 = vmatpush.msra.mxu0 %v440
    %v442 = vand.u32 %v59, 4294901760
    %443 = vmatpush.msra.mxu0 %v442
    %v444 = vand.u32 %v58, 4294901760
    %445 = vmatpush.msra.mxu0 %v444
    %v446 = vand.u32 %v57, 4294901760
    %447 = vmatpush.msra.mxu0 %v446
    %v448 = vand.u32 %v56, 4294901760
    %449 = vmatpush.msra.mxu0 %v448
    %v450 = vand.u32 %v55, 4294901760
    %451 = vmatpush.msra.mxu0 %v450
    %v452 = vand.u32 %v54, 4294901760
    %453 = vmatpush.msra.mxu0 %v452
    %v454 = vand.u32 %v35, 4294901760
    %455 = vmatmul.f32.gmra.mxu0 %v454
    %v456 = vpop.f32.mrf.mxu0
    %v457 = vadd.f32 %v420, %v456
    %458 = vdwg.mxu0
    %v459 = vand.u32 %v85, 4294901760
    %460 = vmatpush.msra.mxu0 %v459
    %v461 = vand.u32 %v84, 4294901760
    %462 = vmatpush.msra.mxu0 %v461
    %v463 = vand.u32 %v83, 4294901760
    %464 = vmatpush.msra.mxu0 %v463
    %v465 = vand.u32 %v82, 4294901760
    %466 = vmatpush.msra.mxu0 %v465
    %v467 = vand.u32 %v81, 4294901760
    %468 = vmatpush.msra.mxu0 %v467
    %v469 = vand.u32 %v80, 4294901760
    %470 = vmatpush.msra.mxu0 %v469
    %v471 = vand.u32 %v79, 4294901760
    %472 = vmatpush.msra.mxu0 %v471
    %v473 = vand.u32 %v78, 4294901760
    %474 = vmatpush.msra.mxu0 %v473
    %v475 = vand.u32 %v77, 4294901760
    %476 = vmatpush.msra.mxu0 %v475
    %v477 = vand.u32 %v76, 4294901760
    %478 = vmatpush.msra.mxu0 %v477
    %v479 = vand.u32 %v75, 4294901760
    %480 = vmatpush.msra.mxu0 %v479
    %v481 = vand.u32 %v74, 4294901760
    %482 = vmatpush.msra.mxu0 %v481
    %v483 = vand.u32 %v73, 4294901760
    %484 = vmatpush.msra.mxu0 %v483
    %v485 = vand.u32 %v72, 4294901760
    %486 = vmatpush.msra.mxu0 %v485
    %v487 = vand.u32 %v71, 4294901760
    %488 = vmatpush.msra.mxu0 %v487
    %v489 = vand.u32 %v70, 4294901760
    %490 = vmatpush.msra.mxu0 %v489
    %v491 = vand.u32 %v41, 4294901760
    %v492 = vsub.f32 %v41, %v491
    %v493 = vand.u32 %v492, 4294901760
    %v494 = vsub.f32 %v492, %v493
    %v495 = vand.u32 %v494, 4294901760
    %496 = vmatmul.f32.gmra.mxu0 %v495
    %v497 = vpop.f32.mrf.mxu0
    %v498 = vadd.f32 %v457, %v497
    %499 = vdwg.mxu0
    %v500 = vand.u32 %v85, 4294901760
    %v501 = vsub.f32 %v85, %v500
    %v502 = vand.u32 %v501, 4294901760
    %v503 = vsub.f32 %v501, %v502
    %v504 = vand.u32 %v503, 4294901760
    %505 = vmatpush.msra.mxu0 %v504
    %v506 = vand.u32 %v84, 4294901760
    %v507 = vsub.f32 %v84, %v506
    %v508 = vand.u32 %v507, 4294901760
    %v509 = vsub.f32 %v507, %v508
    %v510 = vand.u32 %v509, 4294901760
    %511 = vmatpush.msra.mxu0 %v510
    %v512 = vand.u32 %v83, 4294901760
    %v513 = vsub.f32 %v83, %v512
    %v514 = vand.u32 %v513, 4294901760
    %v515 = vsub.f32 %v513, %v514
    %v516 = vand.u32 %v515, 4294901760
    %517 = vmatpush.msra.mxu0 %v516
    %v518 = vand.u32 %v82, 4294901760
    %v519 = vsub.f32 %v82, %v518
    %v520 = vand.u32 %v519, 4294901760
    %v521 = vsub.f32 %v519, %v520
    %v522 = vand.u32 %v521, 4294901760
    %523 = vmatpush.msra.mxu0 %v522
    %v524 = vand.u32 %v81, 4294901760
    %v525 = vsub.f32 %v81, %v524
    %v526 = vand.u32 %v525, 4294901760
    %v527 = vsub.f32 %v525, %v526
    %v528 = vand.u32 %v527, 4294901760
    %529 = vmatpush.msra.mxu0 %v528
    %v530 = vand.u32 %v80, 4294901760
    %v531 = vsub.f32 %v80, %v530
    %v532 = vand.u32 %v531, 4294901760
    %v533 = vsub.f32 %v531, %v532
    %v534 = vand.u32 %v533, 4294901760
    %535 = vmatpush.msra.mxu0 %v534
    %v536 = vand.u32 %v79, 4294901760
    %v537 = vsub.f32 %v79, %v536
    %v538 = vand.u32 %v537, 4294901760
    %v539 = vsub.f32 %v537, %v538
    %v540 = vand.u32 %v539, 4294901760
    %541 = vmatpush.msra.mxu0 %v540
    %v542 = vand.u32 %v78, 4294901760
    %v543 = vsub.f32 %v78, %v542
    %v544 = vand.u32 %v543, 4294901760
    %v545 = vsub.f32 %v543, %v544
    %v546 = vand.u32 %v545, 4294901760
    %547 = vmatpush.msra.mxu0 %v546
    %v548 = vand.u32 %v77, 4294901760
    %v549 = vsub.f32 %v77, %v548
    %v550 = vand.u32 %v549, 4294901760
    %v551 = vsub.f32 %v549, %v550
    %v552 = vand.u32 %v551, 4294901760
    %553 = vmatpush.msra.mxu0 %v552
    %v554 = vand.u32 %v76, 4294901760
    %v555 = vsub.f32 %v76, %v554
    %v556 = vand.u32 %v555, 4294901760
    %v557 = vsub.f32 %v555, %v556
    %v558 = vand.u32 %v557, 4294901760
    %559 = vmatpush.msra.mxu0 %v558
    %v560 = vand.u32 %v75, 4294901760
    %v561 = vsub.f32 %v75, %v560
    %v562 = vand.u32 %v561, 4294901760
    %v563 = vsub.f32 %v561, %v562
    %v564 = vand.u32 %v563, 4294901760
    %565 = vmatpush.msra.mxu0 %v564
    %v566 = vand.u32 %v74, 4294901760
    %v567 = vsub.f32 %v74, %v566
    %v568 = vand.u32 %v567, 4294901760
    %v569 = vsub.f32 %v567, %v568
    %v570 = vand.u32 %v569, 4294901760
    %571 = vmatpush.msra.mxu0 %v570
    %v572 = vand.u32 %v73, 4294901760
    %v573 = vsub.f32 %v73, %v572
    %v574 = vand.u32 %v573, 4294901760
    %v575 = vsub.f32 %v573, %v574
    %v576 = vand.u32 %v575, 4294901760
    %577 = vmatpush.msra.mxu0 %v576
    %v578 = vand.u32 %v72, 4294901760
    %v579 = vsub.f32 %v72, %v578
    %v580 = vand.u32 %v579, 4294901760
    %v581 = vsub.f32 %v579, %v580
    %v582 = vand.u32 %v581, 4294901760
    %583 = vmatpush.msra.mxu0 %v582
    %v584 = vand.u32 %v71, 4294901760
    %v585 = vsub.f32 %v71, %v584
    %v586 = vand.u32 %v585, 4294901760
    %v587 = vsub.f32 %v585, %v586
    %v588 = vand.u32 %v587, 4294901760
    %589 = vmatpush.msra.mxu0 %v588
    %v590 = vand.u32 %v70, 4294901760
    %v591 = vsub.f32 %v70, %v590
    %v592 = vand.u32 %v591, 4294901760
    %v593 = vsub.f32 %v591, %v592
    %v594 = vand.u32 %v593, 4294901760
    %595 = vmatpush.msra.mxu0 %v594
    %v596 = vand.u32 %v41, 4294901760
    %597 = vmatmul.f32.gmra.mxu0 %v596
    %v598 = vpop.f32.mrf.mxu0
    %v599 = vadd.f32 %v498, %v598
    %600 = vdwg.mxu0
    %v601 = vand.u32 %v85, 4294901760
    %v602 = vsub.f32 %v85, %v601
    %603 = vmatpush.msra.mxu0 %v602
    %v604 = vand.u32 %v84, 4294901760
    %v605 = vsub.f32 %v84, %v604
    %606 = vmatpush.msra.mxu0 %v605
    %v607 = vand.u32 %v83, 4294901760
    %v608 = vsub.f32 %v83, %v607
    %609 = vmatpush.msra.mxu0 %v608
    %v610 = vand.u32 %v82, 4294901760
    %v611 = vsub.f32 %v82, %v610
    %612 = vmatpush.msra.mxu0 %v611
    %v613 = vand.u32 %v81, 4294901760
    %v614 = vsub.f32 %v81, %v613
    %615 = vmatpush.msra.mxu0 %v614
    %v616 = vand.u32 %v80, 4294901760
    %v617 = vsub.f32 %v80, %v616
    %618 = vmatpush.msra.mxu0 %v617
    %v619 = vand.u32 %v79, 4294901760
    %v620 = vsub.f32 %v79, %v619
    %621 = vmatpush.msra.mxu0 %v620
    %v622 = vand.u32 %v78, 4294901760
    %v623 = vsub.f32 %v78, %v622
    %624 = vmatpush.msra.mxu0 %v623
    %v625 = vand.u32 %v77, 4294901760
    %v626 = vsub.f32 %v77, %v625
    %627 = vmatpush.msra.mxu0 %v626
    %v628 = vand.u32 %v76, 4294901760
    %v629 = vsub.f32 %v76, %v628
    %630 = vmatpush.msra.mxu0 %v629
    %v631 = vand.u32 %v75, 4294901760
    %v632 = vsub.f32 %v75, %v631
    %633 = vmatpush.msra.mxu0 %v632
    %v634 = vand.u32 %v74, 4294901760
    %v635 = vsub.f32 %v74, %v634
    %636 = vmatpush.msra.mxu0 %v635
    %v637 = vand.u32 %v73, 4294901760
    %v638 = vsub.f32 %v73, %v637
    %639 = vmatpush.msra.mxu0 %v638
    %v640 = vand.u32 %v72, 4294901760
    %v641 = vsub.f32 %v72, %v640
    %642 = vmatpush.msra.mxu0 %v641
    %v643 = vand.u32 %v71, 4294901760
    %v644 = vsub.f32 %v71, %v643
    %645 = vmatpush.msra.mxu0 %v644
    %v646 = vand.u32 %v70, 4294901760
    %v647 = vsub.f32 %v70, %v646
    %648 = vmatpush.msra.mxu0 %v647
    %v649 = vand.u32 %v41, 4294901760
    %v650 = vsub.f32 %v41, %v649
    %651 = vmatmul.f32.gmra.mxu0 %v650
    %v652 = vpop.f32.mrf.mxu0
    %v653 = vadd.f32 %v599, %v652
    %654 = vdwg.mxu0
    %v655 = vand.u32 %v85, 4294901760
    %656 = vmatpush.msra.mxu0 %v655
    %v657 = vand.u32 %v84, 4294901760
    %658 = vmatpush.msra.mxu0 %v657
    %v659 = vand.u32 %v83, 4294901760
    %660 = vmatpush.msra.mxu0 %v659
    %v661 = vand.u32 %v82, 4294901760
    %662 = vmatpush.msra.mxu0 %v661
    %v663 = vand.u32 %v81, 4294901760
    %664 = vmatpush.msra.mxu0 %v663
    %v665 = vand.u32 %v80, 4294901760
    %666 = vmatpush.msra.mxu0 %v665
    %v667 = vand.u32 %v79, 4294901760
    %668 = vmatpush.msra.mxu0 %v667
    %v669 = vand.u32 %v78, 4294901760
    %670 = vmatpush.msra.mxu0 %v669
    %v671 = vand.u32 %v77, 4294901760
    %672 = vmatpush.msra.mxu0 %v671
    %v673 = vand.u32 %v76, 4294901760
    %674 = vmatpush.msra.mxu0 %v673
    %v675 = vand.u32 %v75, 4294901760
    %676 = vmatpush.msra.mxu0 %v675
    %v677 = vand.u32 %v74, 4294901760
    %678 = vmatpush.msra.mxu0 %v677
    %v679 = vand.u32 %v73, 4294901760
    %680 = vmatpush.msra.mxu0 %v679
    %v681 = vand.u32 %v72, 4294901760
    %682 = vmatpush.msra.mxu0 %v681
    %v683 = vand.u32 %v71, 4294901760
    %684 = vmatpush.msra.mxu0 %v683
    %v685 = vand.u32 %v70, 4294901760
    %686 = vmatpush.msra.mxu0 %v685
    %v687 = vand.u32 %v41, 4294901760
    %v688 = vsub.f32 %v41, %v687
    %v689 = vand.u32 %v688, 4294901760
    %690 = vmatmul.f32.gmra.mxu0 %v689
    %v691 = vpop.f32.mrf.mxu0
    %v692 = vadd.f32 %v653, %v691
    %693 = vdwg.mxu0
    %v694 = vand.u32 %v85, 4294901760
    %v695 = vsub.f32 %v85, %v694
    %v696 = vand.u32 %v695, 4294901760
    %697 = vmatpush.msra.mxu0 %v696
    %v698 = vand.u32 %v84, 4294901760
    %v699 = vsub.f32 %v84, %v698
    %v700 = vand.u32 %v699, 4294901760
    %701 = vmatpush.msra.mxu0 %v700
    %v702 = vand.u32 %v83, 4294901760
    %v703 = vsub.f32 %v83, %v702
    %v704 = vand.u32 %v703, 4294901760
    %705 = vmatpush.msra.mxu0 %v704
    %v706 = vand.u32 %v82, 4294901760
    %v707 = vsub.f32 %v82, %v706
    %v708 = vand.u32 %v707, 4294901760
    %709 = vmatpush.msra.mxu0 %v708
    %v710 = vand.u32 %v81, 4294901760
    %v711 = vsub.f32 %v81, %v710
    %v712 = vand.u32 %v711, 4294901760
    %713 = vmatpush.msra.mxu0 %v712
    %v714 = vand.u32 %v80, 4294901760
    %v715 = vsub.f32 %v80, %v714
    %v716 = vand.u32 %v715, 4294901760
    %717 = vmatpush.msra.mxu0 %v716
    %v718 = vand.u32 %v79, 4294901760
    %v719 = vsub.f32 %v79, %v718
    %v720 = vand.u32 %v719, 4294901760
    %721 = vmatpush.msra.mxu0 %v720
    %v722 = vand.u32 %v78, 4294901760
    %v723 = vsub.f32 %v78, %v722
    %v724 = vand.u32 %v723, 4294901760
    %725 = vmatpush.msra.mxu0 %v724
    %v726 = vand.u32 %v77, 4294901760
    %v727 = vsub.f32 %v77, %v726
    %v728 = vand.u32 %v727, 4294901760
    %729 = vmatpush.msra.mxu0 %v728
    %v730 = vand.u32 %v76, 4294901760
    %v731 = vsub.f32 %v76, %v730
    %v732 = vand.u32 %v731, 4294901760
    %733 = vmatpush.msra.mxu0 %v732
    %v734 = vand.u32 %v75, 4294901760
    %v735 = vsub.f32 %v75, %v734
    %v736 = vand.u32 %v735, 4294901760
    %737 = vmatpush.msra.mxu0 %v736
    %v738 = vand.u32 %v74, 4294901760
    %v739 = vsub.f32 %v74, %v738
    %v740 = vand.u32 %v739, 4294901760
    %741 = vmatpush.msra.mxu0 %v740
    %v742 = vand.u32 %v73, 4294901760
    %v743 = vsub.f32 %v73, %v742
    %v744 = vand.u32 %v743, 4294901760
    %745 = vmatpush.msra.mxu0 %v744
    %v746 = vand.u32 %v72, 4294901760
    %v747 = vsub.f32 %v72, %v746
    %v748 = vand.u32 %v747, 4294901760
    %749 = vmatpush.msra.mxu0 %v748
    %v750 = vand.u32 %v71, 4294901760
    %v751 = vsub.f32 %v71, %v750
    %v752 = vand.u32 %v751, 4294901760
    %753 = vmatpush.msra.mxu0 %v752
    %v754 = vand.u32 %v70, 4294901760
    %v755 = vsub.f32 %v70, %v754
    %v756 = vand.u32 %v755, 4294901760
    %757 = vmatpush.msra.mxu0 %v756
    %v758 = vand.u32 %v41, 4294901760
    %759 = vmatmul.f32.gmra.mxu0 %v758
    %v760 = vpop.f32.mrf.mxu0
    %v761 = vadd.f32 %v692, %v760
    %762 = vdwg.mxu0
    %v763 = vand.u32 %v85, 4294901760
    %764 = vmatpush.msra.mxu0 %v763
    %v765 = vand.u32 %v84, 4294901760
    %766 = vmatpush.msra.mxu0 %v765
    %v767 = vand.u32 %v83, 4294901760
    %768 = vmatpush.msra.mxu0 %v767
    %v769 = vand.u32 %v82, 4294901760
    %770 = vmatpush.msra.mxu0 %v769
    %v771 = vand.u32 %v81, 4294901760
    %772 = vmatpush.msra.mxu0 %v771
    %v773 = vand.u32 %v80, 4294901760
    %774 = vmatpush.msra.mxu0 %v773
    %v775 = vand.u32 %v79, 4294901760
    %776 = vmatpush.msra.mxu0 %v775
    %v777 = vand.u32 %v78, 4294901760
    %778 = vmatpush.msra.mxu0 %v777
    %v779 = vand.u32 %v77, 4294901760
    %780 = vmatpush.msra.mxu0 %v779
    %v781 = vand.u32 %v76, 4294901760
    %782 = vmatpush.msra.mxu0 %v781
    %v783 = vand.u32 %v75, 4294901760
    %784 = vmatpush.msra.mxu0 %v783
    %v785 = vand.u32 %v74, 4294901760
    %786 = vmatpush.msra.mxu0 %v785
    %v787 = vand.u32 %v73, 4294901760
    %788 = vmatpush.msra.mxu0 %v787
    %v789 = vand.u32 %v72, 4294901760
    %790 = vmatpush.msra.mxu0 %v789
    %v791 = vand.u32 %v71, 4294901760
    %792 = vmatpush.msra.mxu0 %v791
    %v793 = vand.u32 %v70, 4294901760
    %794 = vmatpush.msra.mxu0 %v793
    %v795 = vand.u32 %v41, 4294901760
    %796 = vmatmul.f32.gmra.mxu0 %v795
    %v797 = vpop.f32.mrf.mxu0
    %v798 = vadd.f32 %v761, %v797
    %799 = vdwg.mxu0
    %v800 = vand.u32 %v101, 4294901760
    %801 = vmatpush.msra.mxu0 %v800
    %v802 = vand.u32 %v100, 4294901760
    %803 = vmatpush.msra.mxu0 %v802
    %v804 = vand.u32 %v99, 4294901760
    %805 = vmatpush.msra.mxu0 %v804
    %v806 = vand.u32 %v98, 4294901760
    %807 = vmatpush.msra.mxu0 %v806
    %v808 = vand.u32 %v97, 4294901760
    %809 = vmatpush.msra.mxu0 %v808
    %v810 = vand.u32 %v96, 4294901760
    %811 = vmatpush.msra.mxu0 %v810
    %v812 = vand.u32 %v95, 4294901760
    %813 = vmatpush.msra.mxu0 %v812
    %v814 = vand.u32 %v94, 4294901760
    %815 = vmatpush.msra.mxu0 %v814
    %v816 = vand.u32 %v93, 4294901760
    %817 = vmatpush.msra.mxu0 %v816
    %v818 = vand.u32 %v92, 4294901760
    %819 = vmatpush.msra.mxu0 %v818
    %v820 = vand.u32 %v91, 4294901760
    %821 = vmatpush.msra.mxu0 %v820
    %v822 = vand.u32 %v90, 4294901760
    %823 = vmatpush.msra.mxu0 %v822
    %v824 = vand.u32 %v89, 4294901760
    %825 = vmatpush.msra.mxu0 %v824
    %v826 = vand.u32 %v88, 4294901760
    %827 = vmatpush.msra.mxu0 %v826
    %v828 = vand.u32 %v87, 4294901760
    %829 = vmatpush.msra.mxu0 %v828
    %v830 = vand.u32 %v86, 4294901760
    %831 = vmatpush.msra.mxu0 %v830
    %v832 = vand.u32 %v47, 4294901760
    %v833 = vsub.f32 %v47, %v832
    %v834 = vand.u32 %v833, 4294901760
    %v835 = vsub.f32 %v833, %v834
    %v836 = vand.u32 %v835, 4294901760
    %837 = vmatmul.f32.gmra.mxu0 %v836
    %v838 = vpop.f32.mrf.mxu0
    %v839 = vadd.f32 %v798, %v838
    %840 = vdwg.mxu0
    %v841 = vand.u32 %v101, 4294901760
    %v842 = vsub.f32 %v101, %v841
    %v843 = vand.u32 %v842, 4294901760
    %v844 = vsub.f32 %v842, %v843
    %v845 = vand.u32 %v844, 4294901760
    %846 = vmatpush.msra.mxu0 %v845
    %v847 = vand.u32 %v100, 4294901760
    %v848 = vsub.f32 %v100, %v847
    %v849 = vand.u32 %v848, 4294901760
    %v850 = vsub.f32 %v848, %v849
    %v851 = vand.u32 %v850, 4294901760
    %852 = vmatpush.msra.mxu0 %v851
    %v853 = vand.u32 %v99, 4294901760
    %v854 = vsub.f32 %v99, %v853
    %v855 = vand.u32 %v854, 4294901760
    %v856 = vsub.f32 %v854, %v855
    %v857 = vand.u32 %v856, 4294901760
    %858 = vmatpush.msra.mxu0 %v857
    %v859 = vand.u32 %v98, 4294901760
    %v860 = vsub.f32 %v98, %v859
    %v861 = vand.u32 %v860, 4294901760
    %v862 = vsub.f32 %v860, %v861
    %v863 = vand.u32 %v862, 4294901760
    %864 = vmatpush.msra.mxu0 %v863
    %v865 = vand.u32 %v97, 4294901760
    %v866 = vsub.f32 %v97, %v865
    %v867 = vand.u32 %v866, 4294901760
    %v868 = vsub.f32 %v866, %v867
    %v869 = vand.u32 %v868, 4294901760
    %870 = vmatpush.msra.mxu0 %v869
    %v871 = vand.u32 %v96, 4294901760
    %v872 = vsub.f32 %v96, %v871
    %v873 = vand.u32 %v872, 4294901760
    %v874 = vsub.f32 %v872, %v873
    %v875 = vand.u32 %v874, 4294901760
    %876 = vmatpush.msra.mxu0 %v875
    %v877 = vand.u32 %v95, 4294901760
    %v878 = vsub.f32 %v95, %v877
    %v879 = vand.u32 %v878, 4294901760
    %v880 = vsub.f32 %v878, %v879
    %v881 = vand.u32 %v880, 4294901760
    %882 = vmatpush.msra.mxu0 %v881
    %v883 = vand.u32 %v94, 4294901760
    %v884 = vsub.f32 %v94, %v883
    %v885 = vand.u32 %v884, 4294901760
    %v886 = vsub.f32 %v884, %v885
    %v887 = vand.u32 %v886, 4294901760
    %888 = vmatpush.msra.mxu0 %v887
    %v889 = vand.u32 %v93, 4294901760
    %v890 = vsub.f32 %v93, %v889
    %v891 = vand.u32 %v890, 4294901760
    %v892 = vsub.f32 %v890, %v891
    %v893 = vand.u32 %v892, 4294901760
    %894 = vmatpush.msra.mxu0 %v893
    %v895 = vand.u32 %v92, 4294901760
    %v896 = vsub.f32 %v92, %v895
    %v897 = vand.u32 %v896, 4294901760
    %v898 = vsub.f32 %v896, %v897
    %v899 = vand.u32 %v898, 4294901760
    %900 = vmatpush.msra.mxu0 %v899
    %v901 = vand.u32 %v91, 4294901760
    %v902 = vsub.f32 %v91, %v901
    %v903 = vand.u32 %v902, 4294901760
    %v904 = vsub.f32 %v902, %v903
    %v905 = vand.u32 %v904, 4294901760
    %906 = vmatpush.msra.mxu0 %v905
    %v907 = vand.u32 %v90, 4294901760
    %v908 = vsub.f32 %v90, %v907
    %v909 = vand.u32 %v908, 4294901760
    %v910 = vsub.f32 %v908, %v909
    %v911 = vand.u32 %v910, 4294901760
    %912 = vmatpush.msra.mxu0 %v911
    %v913 = vand.u32 %v89, 4294901760
    %v914 = vsub.f32 %v89, %v913
    %v915 = vand.u32 %v914, 4294901760
    %v916 = vsub.f32 %v914, %v915
    %v917 = vand.u32 %v916, 4294901760
    %918 = vmatpush.msra.mxu0 %v917
    %v919 = vand.u32 %v88, 4294901760
    %v920 = vsub.f32 %v88, %v919
    %v921 = vand.u32 %v920, 4294901760
    %v922 = vsub.f32 %v920, %v921
    %v923 = vand.u32 %v922, 4294901760
    %924 = vmatpush.msra.mxu0 %v923
    %v925 = vand.u32 %v87, 4294901760
    %v926 = vsub.f32 %v87, %v925
    %v927 = vand.u32 %v926, 4294901760
    %v928 = vsub.f32 %v926, %v927
    %v929 = vand.u32 %v928, 4294901760
    %930 = vmatpush.msra.mxu0 %v929
    %v931 = vand.u32 %v86, 4294901760
    %v932 = vsub.f32 %v86, %v931
    %v933 = vand.u32 %v932, 4294901760
    %v934 = vsub.f32 %v932, %v933
    %v935 = vand.u32 %v934, 4294901760
    %936 = vmatpush.msra.mxu0 %v935
    %v937 = vand.u32 %v47, 4294901760
    %938 = vmatmul.f32.gmra.mxu0 %v937
    %v939 = vpop.f32.mrf.mxu0
    %v940 = vadd.f32 %v839, %v939
    %941 = vdwg.mxu0
    %v942 = vand.u32 %v101, 4294901760
    %v943 = vsub.f32 %v101, %v942
    %944 = vmatpush.msra.mxu0 %v943
    %v945 = vand.u32 %v100, 4294901760
    %v946 = vsub.f32 %v100, %v945
    %947 = vmatpush.msra.mxu0 %v946
    %v948 = vand.u32 %v99, 4294901760
    %v949 = vsub.f32 %v99, %v948
    %950 = vmatpush.msra.mxu0 %v949
    %v951 = vand.u32 %v98, 4294901760
    %v952 = vsub.f32 %v98, %v951
    %953 = vmatpush.msra.mxu0 %v952
    %v954 = vand.u32 %v97, 4294901760
    %v955 = vsub.f32 %v97, %v954
    %956 = vmatpush.msra.mxu0 %v955
    %v957 = vand.u32 %v96, 4294901760
    %v958 = vsub.f32 %v96, %v957
    %959 = vmatpush.msra.mxu0 %v958
    %v960 = vand.u32 %v95, 4294901760
    %v961 = vsub.f32 %v95, %v960
    %962 = vmatpush.msra.mxu0 %v961
    %v963 = vand.u32 %v94, 4294901760
    %v964 = vsub.f32 %v94, %v963
    %965 = vmatpush.msra.mxu0 %v964
    %v966 = vand.u32 %v93, 4294901760
    %v967 = vsub.f32 %v93, %v966
    %968 = vmatpush.msra.mxu0 %v967
    %v969 = vand.u32 %v92, 4294901760
    %v970 = vsub.f32 %v92, %v969
    %971 = vmatpush.msra.mxu0 %v970
    %v972 = vand.u32 %v91, 4294901760
    %v973 = vsub.f32 %v91, %v972
    %974 = vmatpush.msra.mxu0 %v973
    %v975 = vand.u32 %v90, 4294901760
    %v976 = vsub.f32 %v90, %v975
    %977 = vmatpush.msra.mxu0 %v976
    %v978 = vand.u32 %v89, 4294901760
    %v979 = vsub.f32 %v89, %v978
    %980 = vmatpush.msra.mxu0 %v979
    %v981 = vand.u32 %v88, 4294901760
    %v982 = vsub.f32 %v88, %v981
    %983 = vmatpush.msra.mxu0 %v982
    %v984 = vand.u32 %v87, 4294901760
    %v985 = vsub.f32 %v87, %v984
    %986 = vmatpush.msra.mxu0 %v985
    %v987 = vand.u32 %v86, 4294901760
    %v988 = vsub.f32 %v86, %v987
    %989 = vmatpush.msra.mxu0 %v988
    %v990 = vand.u32 %v47, 4294901760
    %v991 = vsub.f32 %v47, %v990
    %992 = vmatmul.f32.gmra.mxu0 %v991
    %v993 = vpop.f32.mrf.mxu0
    %v994 = vadd.f32 %v940, %v993
    %995 = vdwg.mxu0
    %v996 = vand.u32 %v101, 4294901760
    %997 = vmatpush.msra.mxu0 %v996
    %v998 = vand.u32 %v100, 4294901760
    %999 = vmatpush.msra.mxu0 %v998
    %v1000 = vand.u32 %v99, 4294901760
    %1001 = vmatpush.msra.mxu0 %v1000
    %v1002 = vand.u32 %v98, 4294901760
    %1003 = vmatpush.msra.mxu0 %v1002
    %v1004 = vand.u32 %v97, 4294901760
    %1005 = vmatpush.msra.mxu0 %v1004
    %v1006 = vand.u32 %v96, 4294901760
    %1007 = vmatpush.msra.mxu0 %v1006
    %v1008 = vand.u32 %v95, 4294901760
    %1009 = vmatpush.msra.mxu0 %v1008
    %v1010 = vand.u32 %v94, 4294901760
    %1011 = vmatpush.msra.mxu0 %v1010
    %v1012 = vand.u32 %v93, 4294901760
    %1013 = vmatpush.msra.mxu0 %v1012
    %v1014 = vand.u32 %v92, 4294901760
    %1015 = vmatpush.msra.mxu0 %v1014
    %v1016 = vand.u32 %v91, 4294901760
    %1017 = vmatpush.msra.mxu0 %v1016
    %v1018 = vand.u32 %v90, 4294901760
    %1019 = vmatpush.msra.mxu0 %v1018
    %v1020 = vand.u32 %v89, 4294901760
    %1021 = vmatpush.msra.mxu0 %v1020
    %v1022 = vand.u32 %v88, 4294901760
    %1023 = vmatpush.msra.mxu0 %v1022
    %v1024 = vand.u32 %v87, 4294901760
    %1025 = vmatpush.msra.mxu0 %v1024
    %v1026 = vand.u32 %v86, 4294901760
    %1027 = vmatpush.msra.mxu0 %v1026
    %v1028 = vand.u32 %v47, 4294901760
    %v1029 = vsub.f32 %v47, %v1028
    %v1030 = vand.u32 %v1029, 4294901760
    %1031 = vmatmul.f32.gmra.mxu0 %v1030
    %v1032 = vpop.f32.mrf.mxu0
    %v1033 = vadd.f32 %v994, %v1032
    %1034 = vdwg.mxu0
    %v1035 = vand.u32 %v101, 4294901760
    %v1036 = vsub.f32 %v101, %v1035
    %v1037 = vand.u32 %v1036, 4294901760
    %1038 = vmatpush.msra.mxu0 %v1037
    %v1039 = vand.u32 %v100, 4294901760
    %v1040 = vsub.f32 %v100, %v1039
    %v1041 = vand.u32 %v1040, 4294901760
    %1042 = vmatpush.msra.mxu0 %v1041
    %v1043 = vand.u32 %v99, 4294901760
    %v1044 = vsub.f32 %v99, %v1043
    %v1045 = vand.u32 %v1044, 4294901760
    %1046 = vmatpush.msra.mxu0 %v1045
    %v1047 = vand.u32 %v98, 4294901760
    %v1048 = vsub.f32 %v98, %v1047
    %v1049 = vand.u32 %v1048, 4294901760
    %1050 = vmatpush.msra.mxu0 %v1049
    %v1051 = vand.u32 %v97, 4294901760
    %v1052 = vsub.f32 %v97, %v1051
    %v1053 = vand.u32 %v1052, 4294901760
    %1054 = vmatpush.msra.mxu0 %v1053
    %v1055 = vand.u32 %v96, 4294901760
    %v1056 = vsub.f32 %v96, %v1055
    %v1057 = vand.u32 %v1056, 4294901760
    %1058 = vmatpush.msra.mxu0 %v1057
    %v1059 = vand.u32 %v95, 4294901760
    %v1060 = vsub.f32 %v95, %v1059
    %v1061 = vand.u32 %v1060, 4294901760
    %1062 = vmatpush.msra.mxu0 %v1061
    %v1063 = vand.u32 %v94, 4294901760
    %v1064 = vsub.f32 %v94, %v1063
    %v1065 = vand.u32 %v1064, 4294901760
    %1066 = vmatpush.msra.mxu0 %v1065
    %v1067 = vand.u32 %v93, 4294901760
    %v1068 = vsub.f32 %v93, %v1067
    %v1069 = vand.u32 %v1068, 4294901760
    %1070 = vmatpush.msra.mxu0 %v1069
    %v1071 = vand.u32 %v92, 4294901760
    %v1072 = vsub.f32 %v92, %v1071
    %v1073 = vand.u32 %v1072, 4294901760
    %1074 = vmatpush.msra.mxu0 %v1073
    %v1075 = vand.u32 %v91, 4294901760
    %v1076 = vsub.f32 %v91, %v1075
    %v1077 = vand.u32 %v1076, 4294901760
    %1078 = vmatpush.msra.mxu0 %v1077
    %v1079 = vand.u32 %v90, 4294901760
    %v1080 = vsub.f32 %v90, %v1079
    %v1081 = vand.u32 %v1080, 4294901760
    %1082 = vmatpush.msra.mxu0 %v1081
    %v1083 = vand.u32 %v89, 4294901760
    %v1084 = vsub.f32 %v89, %v1083
    %v1085 = vand.u32 %v1084, 4294901760
    %1086 = vmatpush.msra.mxu0 %v1085
    %v1087 = vand.u32 %v88, 4294901760
    %v1088 = vsub.f32 %v88, %v1087
    %v1089 = vand.u32 %v1088, 4294901760
    %1090 = vmatpush.msra.mxu0 %v1089
    %v1091 = vand.u32 %v87, 4294901760
    %v1092 = vsub.f32 %v87, %v1091
    %v1093 = vand.u32 %v1092, 4294901760
    %1094 = vmatpush.msra.mxu0 %v1093
    %v1095 = vand.u32 %v86, 4294901760
    %v1096 = vsub.f32 %v86, %v1095
    %v1097 = vand.u32 %v1096, 4294901760
    %1098 = vmatpush.msra.mxu0 %v1097
    %v1099 = vand.u32 %v47, 4294901760
    %1100 = vmatmul.f32.gmra.mxu0 %v1099
    %v1101 = vpop.f32.mrf.mxu0
    %v1102 = vadd.f32 %v1033, %v1101
    %1103 = vdwg.mxu0
    %v1104 = vand.u32 %v101, 4294901760
    %1105 = vmatpush.msra.mxu0 %v1104
    %v1106 = vand.u32 %v100, 4294901760
    %1107 = vmatpush.msra.mxu0 %v1106
    %v1108 = vand.u32 %v99, 4294901760
    %1109 = vmatpush.msra.mxu0 %v1108
    %v1110 = vand.u32 %v98, 4294901760
    %1111 = vmatpush.msra.mxu0 %v1110
    %v1112 = vand.u32 %v97, 4294901760
    %1113 = vmatpush.msra.mxu0 %v1112
    %v1114 = vand.u32 %v96, 4294901760
    %1115 = vmatpush.msra.mxu0 %v1114
    %v1116 = vand.u32 %v95, 4294901760
    %1117 = vmatpush.msra.mxu0 %v1116
    %v1118 = vand.u32 %v94, 4294901760
    %1119 = vmatpush.msra.mxu0 %v1118
    %v1120 = vand.u32 %v93, 4294901760
    %1121 = vmatpush.msra.mxu0 %v1120
    %v1122 = vand.u32 %v92, 4294901760
    %1123 = vmatpush.msra.mxu0 %v1122
    %v1124 = vand.u32 %v91, 4294901760
    %1125 = vmatpush.msra.mxu0 %v1124
    %v1126 = vand.u32 %v90, 4294901760
    %1127 = vmatpush.msra.mxu0 %v1126
    %v1128 = vand.u32 %v89, 4294901760
    %1129 = vmatpush.msra.mxu0 %v1128
    %v1130 = vand.u32 %v88, 4294901760
    %1131 = vmatpush.msra.mxu0 %v1130
    %v1132 = vand.u32 %v87, 4294901760
    %1133 = vmatpush.msra.mxu0 %v1132
    %v1134 = vand.u32 %v86, 4294901760
    %1135 = vmatpush.msra.mxu0 %v1134
    %v1136 = vand.u32 %v47, 4294901760
    %1137 = vmatmul.f32.gmra.mxu0 %v1136
    %v1138 = vpop.f32.mrf.mxu0
    %v1139 = vadd.f32 %v1102, %v1138
    %1140 = vdwg.mxu0
    %v1141 = vand.u32 %v117, 4294901760
    %1142 = vmatpush.msra.mxu0 %v1141
    %v1143 = vand.u32 %v116, 4294901760
    %1144 = vmatpush.msra.mxu0 %v1143
    %v1145 = vand.u32 %v115, 4294901760
    %1146 = vmatpush.msra.mxu0 %v1145
    %v1147 = vand.u32 %v114, 4294901760
    %1148 = vmatpush.msra.mxu0 %v1147
    %v1149 = vand.u32 %v113, 4294901760
    %1150 = vmatpush.msra.mxu0 %v1149
    %v1151 = vand.u32 %v112, 4294901760
    %1152 = vmatpush.msra.mxu0 %v1151
    %v1153 = vand.u32 %v111, 4294901760
    %1154 = vmatpush.msra.mxu0 %v1153
    %v1155 = vand.u32 %v110, 4294901760
    %1156 = vmatpush.msra.mxu0 %v1155
    %v1157 = vand.u32 %v109, 4294901760
    %1158 = vmatpush.msra.mxu0 %v1157
    %v1159 = vand.u32 %v108, 4294901760
    %1160 = vmatpush.msra.mxu0 %v1159
    %v1161 = vand.u32 %v107, 4294901760
    %1162 = vmatpush.msra.mxu0 %v1161
    %v1163 = vand.u32 %v106, 4294901760
    %1164 = vmatpush.msra.mxu0 %v1163
    %v1165 = vand.u32 %v105, 4294901760
    %1166 = vmatpush.msra.mxu0 %v1165
    %v1167 = vand.u32 %v104, 4294901760
    %1168 = vmatpush.msra.mxu0 %v1167
    %v1169 = vand.u32 %v103, 4294901760
    %1170 = vmatpush.msra.mxu0 %v1169
    %v1171 = vand.u32 %v102, 4294901760
    %1172 = vmatpush.msra.mxu0 %v1171
    %v1173 = vand.u32 %v53, 4294901760
    %v1174 = vsub.f32 %v53, %v1173
    %v1175 = vand.u32 %v1174, 4294901760
    %v1176 = vsub.f32 %v1174, %v1175
    %v1177 = vand.u32 %v1176, 4294901760
    %1178 = vmatmul.f32.gmra.mxu0 %v1177
    %v1179 = vpop.f32.mrf.mxu0
    %v1180 = vadd.f32 %v1139, %v1179
    %1181 = vdwg.mxu0
    %v1182 = vand.u32 %v117, 4294901760
    %v1183 = vsub.f32 %v117, %v1182
    %v1184 = vand.u32 %v1183, 4294901760
    %v1185 = vsub.f32 %v1183, %v1184
    %v1186 = vand.u32 %v1185, 4294901760
    %1187 = vmatpush.msra.mxu0 %v1186
    %v1188 = vand.u32 %v116, 4294901760
    %v1189 = vsub.f32 %v116, %v1188
    %v1190 = vand.u32 %v1189, 4294901760
    %v1191 = vsub.f32 %v1189, %v1190
    %v1192 = vand.u32 %v1191, 4294901760
    %1193 = vmatpush.msra.mxu0 %v1192
    %v1194 = vand.u32 %v115, 4294901760
    %v1195 = vsub.f32 %v115, %v1194
    %v1196 = vand.u32 %v1195, 4294901760
    %v1197 = vsub.f32 %v1195, %v1196
    %v1198 = vand.u32 %v1197, 4294901760
    %1199 = vmatpush.msra.mxu0 %v1198
    %v1200 = vand.u32 %v114, 4294901760
    %v1201 = vsub.f32 %v114, %v1200
    %v1202 = vand.u32 %v1201, 4294901760
    %v1203 = vsub.f32 %v1201, %v1202
    %v1204 = vand.u32 %v1203, 4294901760
    %1205 = vmatpush.msra.mxu0 %v1204
    %v1206 = vand.u32 %v113, 4294901760
    %v1207 = vsub.f32 %v113, %v1206
    %v1208 = vand.u32 %v1207, 4294901760
    %v1209 = vsub.f32 %v1207, %v1208
    %v1210 = vand.u32 %v1209, 4294901760
    %1211 = vmatpush.msra.mxu0 %v1210
    %v1212 = vand.u32 %v112, 4294901760
    %v1213 = vsub.f32 %v112, %v1212
    %v1214 = vand.u32 %v1213, 4294901760
    %v1215 = vsub.f32 %v1213, %v1214
    %v1216 = vand.u32 %v1215, 4294901760
    %1217 = vmatpush.msra.mxu0 %v1216
    %v1218 = vand.u32 %v111, 4294901760
    %v1219 = vsub.f32 %v111, %v1218
    %v1220 = vand.u32 %v1219, 4294901760
    %v1221 = vsub.f32 %v1219, %v1220
    %v1222 = vand.u32 %v1221, 4294901760
    %1223 = vmatpush.msra.mxu0 %v1222
    %v1224 = vand.u32 %v110, 4294901760
    %v1225 = vsub.f32 %v110, %v1224
    %v1226 = vand.u32 %v1225, 4294901760
    %v1227 = vsub.f32 %v1225, %v1226
    %v1228 = vand.u32 %v1227, 4294901760
    %1229 = vmatpush.msra.mxu0 %v1228
    %v1230 = vand.u32 %v109, 4294901760
    %v1231 = vsub.f32 %v109, %v1230
    %v1232 = vand.u32 %v1231, 4294901760
    %v1233 = vsub.f32 %v1231, %v1232
    %v1234 = vand.u32 %v1233, 4294901760
    %1235 = vmatpush.msra.mxu0 %v1234
    %v1236 = vand.u32 %v108, 4294901760
    %v1237 = vsub.f32 %v108, %v1236
    %v1238 = vand.u32 %v1237, 4294901760
    %v1239 = vsub.f32 %v1237, %v1238
    %v1240 = vand.u32 %v1239, 4294901760
    %1241 = vmatpush.msra.mxu0 %v1240
    %v1242 = vand.u32 %v107, 4294901760
    %v1243 = vsub.f32 %v107, %v1242
    %v1244 = vand.u32 %v1243, 4294901760
    %v1245 = vsub.f32 %v1243, %v1244
    %v1246 = vand.u32 %v1245, 4294901760
    %1247 = vmatpush.msra.mxu0 %v1246
    %v1248 = vand.u32 %v106, 4294901760
    %v1249 = vsub.f32 %v106, %v1248
    %v1250 = vand.u32 %v1249, 4294901760
    %v1251 = vsub.f32 %v1249, %v1250
    %v1252 = vand.u32 %v1251, 4294901760
    %1253 = vmatpush.msra.mxu0 %v1252
    %v1254 = vand.u32 %v105, 4294901760
    %v1255 = vsub.f32 %v105, %v1254
    %v1256 = vand.u32 %v1255, 4294901760
    %v1257 = vsub.f32 %v1255, %v1256
    %v1258 = vand.u32 %v1257, 4294901760
    %1259 = vmatpush.msra.mxu0 %v1258
    %v1260 = vand.u32 %v104, 4294901760
    %v1261 = vsub.f32 %v104, %v1260
    %v1262 = vand.u32 %v1261, 4294901760
    %v1263 = vsub.f32 %v1261, %v1262
    %v1264 = vand.u32 %v1263, 4294901760
    %1265 = vmatpush.msra.mxu0 %v1264
    %v1266 = vand.u32 %v103, 4294901760
    %v1267 = vsub.f32 %v103, %v1266
    %v1268 = vand.u32 %v1267, 4294901760
    %v1269 = vsub.f32 %v1267, %v1268
    %v1270 = vand.u32 %v1269, 4294901760
    %1271 = vmatpush.msra.mxu0 %v1270
    %v1272 = vand.u32 %v102, 4294901760
    %v1273 = vsub.f32 %v102, %v1272
    %v1274 = vand.u32 %v1273, 4294901760
    %v1275 = vsub.f32 %v1273, %v1274
    %v1276 = vand.u32 %v1275, 4294901760
    %1277 = vmatpush.msra.mxu0 %v1276
    %v1278 = vand.u32 %v53, 4294901760
    %1279 = vmatmul.f32.gmra.mxu0 %v1278
    %v1280 = vpop.f32.mrf.mxu0
    %v1281 = vadd.f32 %v1180, %v1280
    %1282 = vdwg.mxu0
    %v1283 = vand.u32 %v117, 4294901760
    %v1284 = vsub.f32 %v117, %v1283
    %1285 = vmatpush.msra.mxu0 %v1284
    %v1286 = vand.u32 %v116, 4294901760
    %v1287 = vsub.f32 %v116, %v1286
    %1288 = vmatpush.msra.mxu0 %v1287
    %v1289 = vand.u32 %v115, 4294901760
    %v1290 = vsub.f32 %v115, %v1289
    %1291 = vmatpush.msra.mxu0 %v1290
    %v1292 = vand.u32 %v114, 4294901760
    %v1293 = vsub.f32 %v114, %v1292
    %1294 = vmatpush.msra.mxu0 %v1293
    %v1295 = vand.u32 %v113, 4294901760
    %v1296 = vsub.f32 %v113, %v1295
    %1297 = vmatpush.msra.mxu0 %v1296
    %v1298 = vand.u32 %v112, 4294901760
    %v1299 = vsub.f32 %v112, %v1298
    %1300 = vmatpush.msra.mxu0 %v1299
    %v1301 = vand.u32 %v111, 4294901760
    %v1302 = vsub.f32 %v111, %v1301
    %1303 = vmatpush.msra.mxu0 %v1302
    %v1304 = vand.u32 %v110, 4294901760
    %v1305 = vsub.f32 %v110, %v1304
    %1306 = vmatpush.msra.mxu0 %v1305
    %v1307 = vand.u32 %v109, 4294901760
    %v1308 = vsub.f32 %v109, %v1307
    %1309 = vmatpush.msra.mxu0 %v1308
    %v1310 = vand.u32 %v108, 4294901760
    %v1311 = vsub.f32 %v108, %v1310
    %1312 = vmatpush.msra.mxu0 %v1311
    %v1313 = vand.u32 %v107, 4294901760
    %v1314 = vsub.f32 %v107, %v1313
    %1315 = vmatpush.msra.mxu0 %v1314
    %v1316 = vand.u32 %v106, 4294901760
    %v1317 = vsub.f32 %v106, %v1316
    %1318 = vmatpush.msra.mxu0 %v1317
    %v1319 = vand.u32 %v105, 4294901760
    %v1320 = vsub.f32 %v105, %v1319
    %1321 = vmatpush.msra.mxu0 %v1320
    %v1322 = vand.u32 %v104, 4294901760
    %v1323 = vsub.f32 %v104, %v1322
    %1324 = vmatpush.msra.mxu0 %v1323
    %v1325 = vand.u32 %v103, 4294901760
    %v1326 = vsub.f32 %v103, %v1325
    %1327 = vmatpush.msra.mxu0 %v1326
    %v1328 = vand.u32 %v102, 4294901760
    %v1329 = vsub.f32 %v102, %v1328
    %1330 = vmatpush.msra.mxu0 %v1329
    %v1331 = vand.u32 %v53, 4294901760
    %v1332 = vsub.f32 %v53, %v1331
    %1333 = vmatmul.f32.gmra.mxu0 %v1332
    %v1334 = vpop.f32.mrf.mxu0
    %v1335 = vadd.f32 %v1281, %v1334
    %1336 = vdwg.mxu0
    %v1337 = vand.u32 %v117, 4294901760
    %1338 = vmatpush.msra.mxu0 %v1337
    %v1339 = vand.u32 %v116, 4294901760
    %1340 = vmatpush.msra.mxu0 %v1339
    %v1341 = vand.u32 %v115, 4294901760
    %1342 = vmatpush.msra.mxu0 %v1341
    %v1343 = vand.u32 %v114, 4294901760
    %1344 = vmatpush.msra.mxu0 %v1343
    %v1345 = vand.u32 %v113, 4294901760
    %1346 = vmatpush.msra.mxu0 %v1345
    %v1347 = vand.u32 %v112, 4294901760
    %1348 = vmatpush.msra.mxu0 %v1347
    %v1349 = vand.u32 %v111, 4294901760
    %1350 = vmatpush.msra.mxu0 %v1349
    %v1351 = vand.u32 %v110, 4294901760
    %1352 = vmatpush.msra.mxu0 %v1351
    %v1353 = vand.u32 %v109, 4294901760
    %1354 = vmatpush.msra.mxu0 %v1353
    %v1355 = vand.u32 %v108, 4294901760
    %1356 = vmatpush.msra.mxu0 %v1355
    %v1357 = vand.u32 %v107, 4294901760
    %1358 = vmatpush.msra.mxu0 %v1357
    %v1359 = vand.u32 %v106, 4294901760
    %1360 = vmatpush.msra.mxu0 %v1359
    %v1361 = vand.u32 %v105, 4294901760
    %1362 = vmatpush.msra.mxu0 %v1361
    %v1363 = vand.u32 %v104, 4294901760
    %1364 = vmatpush.msra.mxu0 %v1363
    %v1365 = vand.u32 %v103, 4294901760
    %1366 = vmatpush.msra.mxu0 %v1365
    %v1367 = vand.u32 %v102, 4294901760
    %1368 = vmatpush.msra.mxu0 %v1367
    %v1369 = vand.u32 %v53, 4294901760
    %v1370 = vsub.f32 %v53, %v1369
    %v1371 = vand.u32 %v1370, 4294901760
    %1372 = vmatmul.f32.gmra.mxu0 %v1371
    %v1373 = vpop.f32.mrf.mxu0
    %v1374 = vadd.f32 %v1335, %v1373
    %1375 = vdwg.mxu0
    %v1376 = vand.u32 %v117, 4294901760
    %v1377 = vsub.f32 %v117, %v1376
    %v1378 = vand.u32 %v1377, 4294901760
    %1379 = vmatpush.msra.mxu0 %v1378
    %v1380 = vand.u32 %v116, 4294901760
    %v1381 = vsub.f32 %v116, %v1380
    %v1382 = vand.u32 %v1381, 4294901760
    %1383 = vmatpush.msra.mxu0 %v1382
    %v1384 = vand.u32 %v115, 4294901760
    %v1385 = vsub.f32 %v115, %v1384
    %v1386 = vand.u32 %v1385, 4294901760
    %1387 = vmatpush.msra.mxu0 %v1386
    %v1388 = vand.u32 %v114, 4294901760
    %v1389 = vsub.f32 %v114, %v1388
    %v1390 = vand.u32 %v1389, 4294901760
    %1391 = vmatpush.msra.mxu0 %v1390
    %v1392 = vand.u32 %v113, 4294901760
    %v1393 = vsub.f32 %v113, %v1392
    %v1394 = vand.u32 %v1393, 4294901760
    %1395 = vmatpush.msra.mxu0 %v1394
    %v1396 = vand.u32 %v112, 4294901760
    %v1397 = vsub.f32 %v112, %v1396
    %v1398 = vand.u32 %v1397, 4294901760
    %1399 = vmatpush.msra.mxu0 %v1398
    %v1400 = vand.u32 %v111, 4294901760
    %v1401 = vsub.f32 %v111, %v1400
    %v1402 = vand.u32 %v1401, 4294901760
    %1403 = vmatpush.msra.mxu0 %v1402
    %v1404 = vand.u32 %v110, 4294901760
    %v1405 = vsub.f32 %v110, %v1404
    %v1406 = vand.u32 %v1405, 4294901760
    %1407 = vmatpush.msra.mxu0 %v1406
    %v1408 = vand.u32 %v109, 4294901760
    %v1409 = vsub.f32 %v109, %v1408
    %v1410 = vand.u32 %v1409, 4294901760
    %1411 = vmatpush.msra.mxu0 %v1410
    %v1412 = vand.u32 %v108, 4294901760
    %v1413 = vsub.f32 %v108, %v1412
    %v1414 = vand.u32 %v1413, 4294901760
    %1415 = vmatpush.msra.mxu0 %v1414
    %v1416 = vand.u32 %v107, 4294901760
    %v1417 = vsub.f32 %v107, %v1416
    %v1418 = vand.u32 %v1417, 4294901760
    %1419 = vmatpush.msra.mxu0 %v1418
    %v1420 = vand.u32 %v106, 4294901760
    %v1421 = vsub.f32 %v106, %v1420
    %v1422 = vand.u32 %v1421, 4294901760
    %1423 = vmatpush.msra.mxu0 %v1422
    %v1424 = vand.u32 %v105, 4294901760
    %v1425 = vsub.f32 %v105, %v1424
    %v1426 = vand.u32 %v1425, 4294901760
    %1427 = vmatpush.msra.mxu0 %v1426
    %v1428 = vand.u32 %v104, 4294901760
    %v1429 = vsub.f32 %v104, %v1428
    %v1430 = vand.u32 %v1429, 4294901760
    %1431 = vmatpush.msra.mxu0 %v1430
    %v1432 = vand.u32 %v103, 4294901760
    %v1433 = vsub.f32 %v103, %v1432
    %v1434 = vand.u32 %v1433, 4294901760
    %1435 = vmatpush.msra.mxu0 %v1434
    %v1436 = vand.u32 %v102, 4294901760
    %v1437 = vsub.f32 %v102, %v1436
    %v1438 = vand.u32 %v1437, 4294901760
    %1439 = vmatpush.msra.mxu0 %v1438
    %v1440 = vand.u32 %v53, 4294901760
    %1441 = vmatmul.f32.gmra.mxu0 %v1440
    %v1442 = vpop.f32.mrf.mxu0
    %v1443 = vadd.f32 %v1374, %v1442
    %1444 = vdwg.mxu0
    %v1445 = vand.u32 %v117, 4294901760
    %1446 = vmatpush.msra.mxu0 %v1445
    %v1447 = vand.u32 %v116, 4294901760
    %1448 = vmatpush.msra.mxu0 %v1447
    %v1449 = vand.u32 %v115, 4294901760
    %1450 = vmatpush.msra.mxu0 %v1449
    %v1451 = vand.u32 %v114, 4294901760
    %1452 = vmatpush.msra.mxu0 %v1451
    %v1453 = vand.u32 %v113, 4294901760
    %1454 = vmatpush.msra.mxu0 %v1453
    %v1455 = vand.u32 %v112, 4294901760
    %1456 = vmatpush.msra.mxu0 %v1455
    %v1457 = vand.u32 %v111, 4294901760
    %1458 = vmatpush.msra.mxu0 %v1457
    %v1459 = vand.u32 %v110, 4294901760
    %1460 = vmatpush.msra.mxu0 %v1459
    %v1461 = vand.u32 %v109, 4294901760
    %1462 = vmatpush.msra.mxu0 %v1461
    %v1463 = vand.u32 %v108, 4294901760
    %1464 = vmatpush.msra.mxu0 %v1463
    %v1465 = vand.u32 %v107, 4294901760
    %1466 = vmatpush.msra.mxu0 %v1465
    %v1467 = vand.u32 %v106, 4294901760
    %1468 = vmatpush.msra.mxu0 %v1467
    %v1469 = vand.u32 %v105, 4294901760
    %1470 = vmatpush.msra.mxu0 %v1469
    %v1471 = vand.u32 %v104, 4294901760
    %1472 = vmatpush.msra.mxu0 %v1471
    %v1473 = vand.u32 %v103, 4294901760
    %1474 = vmatpush.msra.mxu0 %v1473
    %v1475 = vand.u32 %v102, 4294901760
    %1476 = vmatpush.msra.mxu0 %v1475
    %v1477 = vand.u32 %v53, 4294901760
    %1478 = vmatmul.f32.gmra.mxu0 %v1477
    %v1479 = vpop.f32.mrf.mxu0
    %v1480 = vadd.f32 %v1443, %v1479
    %1481 = vdwg.mxu0
    %1482 = vst [vmem:[%s2] sm:$0xff] %v1480
    // Predicated region
    $region14: #{_features_embedding_forward.1} parent=1 // pred_check
      _
    $region15: #{_features_embedding_forward.1} parent=1 // pred_check_branch
      %1484 = sbr.rel (0) target = $region17
    $region16: #{_features_embedding_forward.1} parent=1 // pred_region
      _
    $region17: #{_features_embedding_forward.1} parent=1 // pred_fallthru
      _
    // Predicated region
    $region18: #{_features_embedding_forward.1} parent=1 // pred_check
      _
    $region19: #{_features_embedding_forward.1} parent=1 // pred_check_branch
      %1486 = sbr.rel (0) target = $region21
    $region20: #{_features_embedding_forward.1} parent=1 // pred_region
      _
    $region21: #{_features_embedding_forward.1} parent=1 // pred_fallthru
      _
    %1487 = vsyncpa [#allocation3], 1

</llo_original>
